<compile_context>
chip_gen: v7x
topology: tpu7x:2x2x1
jax: 0.10.0
libtpu: 0.0.40
codegen_flags: <defaults>
</compile_context>

<pallas_src>
import jax
import jax.numpy as jnp
from jax import lax
from jax.experimental import pallas as pl
from jax.experimental.pallas import tpu as pltpu


def _pred_layer_kernel(sc_ref, nrow_ref,                       # SMEM scalars
                       x_ref, yw_ref, w1_ref, b1_ref, w2_ref,  # VMEM tiles
                       scores_ref, loss_ref):
    # x: (TILE_B, D); yw: (TILE_B, 3) = [b, c, weight]; w1: (D, Hp) bf16;
    # b1/w2: (1, Hp) f32; scores: (TILE_B, 1) i32; loss: (1, 1, 1) f32 partial sum.
    i = pl.program_id(0)
    tile_b = x_ref.shape[0]

    threshold = sc_ref[0]
    bias2 = sc_ref[1]
    n_rows = nrow_ref[0]

    # Linear(d_model -> hidden) on the MXU in bf16 with f32 accumulation, + bias, ReLU.
    h = jnp.dot(x_ref[...].astype(jnp.bfloat16), w1_ref[...],
                preferred_element_type=jnp.float32)
    h = jnp.maximum(h + b1_ref[...], 0.0)

    # Linear(hidden -> 1): lane reduction instead of a degenerate 1-column matmul.
    pred = jnp.sum(h * w2_ref[...], axis=-1, keepdims=True) + bias2      # (TILE_B, 1)

    # scores = y1 >= threshold  (int32 in-kernel, cast to bool outside).
    scores_ref[...] = (pred >= threshold).astype(jnp.int32)

    # Per-tile partial loss: sum(w * ((y1-b)^2 + (y1-c)^2)) over valid rows only.
    rows = i * tile_b + lax.broadcasted_iota(jnp.int32, (tile_b, 1), 0)
    valid = rows < n_rows                                                # tail mask
    b = yw_ref[:, 0:1]
    c = yw_ref[:, 1:2]
    w = yw_ref[:, 2:3]
    err = (pred - b) * (pred - b) + (pred - c) * (pred - c)
    contrib = jnp.where(valid, w * err, 0.0)
    loss_ref[0] = jnp.sum(contrib, axis=0, keepdims=True)                # (1, 1)


def pred_layer_4_regression(x, y, params, threshold, weight_out=None, tile_b=512):
    """PredLayer4Regression forward. Returns (scores: bool[B], loss: f32 scalar)."""
    w1, b1, w2, b2 = params                  # (D,H), (1,H), (1,H), (1,1)
    B, D = x.shape
    H = w1.shape[1]

    # Hidden dim padded to full 128-lane vregs (zero pad -> identical result).
    Hp = ((H + 127) // 128) * 128

    # Batch tile: multiple of 8 sublanes, capped so the double-buffered x block
    # stays small enough for v7x's 64 MiB VMEM even at large d_model.
    tile_cap = max(8, ((4 << 20) // max(1, D * x.dtype.itemsize)) // 8 * 8)
    TILE_B = max(8, min(tile_b, ((B + 7) // 8) * 8, tile_cap))
    G = pl.cdiv(B, TILE_B)

    # Weights: w1 pre-cast to bf16 (MXU operand); b1/w2 stay f32 (VPU math).
    w1p = jnp.zeros((D, Hp), jnp.bfloat16).at[:, :H].set(w1.astype(jnp.bfloat16))
    b1p = jnp.zeros((1, Hp), jnp.float32).at[:, :H].set(
        b1.reshape(1, H).astype(jnp.float32))
    w2p = jnp.zeros((1, Hp), jnp.float32).at[:, :H].set(
        w2.reshape(1, H).astype(jnp.float32))

    # Pack targets + per-row weight into one (B, 3) input: [b, c, w].
    if weight_out is None:
        w_row = jnp.ones((B,), jnp.float32)
    else:
        w_row = weight_out.astype(jnp.float32).reshape(-1)
    yw = jnp.concatenate([y.astype(jnp.float32), w_row[:, None]], axis=1)

    sc_f32 = jnp.concatenate([jnp.asarray([threshold], jnp.float32),
                              b2.reshape(-1).astype(jnp.float32)])   # [threshold, b2]
    n_rows = jnp.asarray([B], jnp.int32)

    # VMEM budget: double-buffered row blocks + resident weights + h tile, 64 MiB cap.
    x_blk = TILE_B * D * x.dtype.itemsize
    need = (2 * (x_blk + TILE_B * 3 * 4 + TILE_B * 4 + 8 * 128 * 4)
            + 2 * (D * Hp * 2 + 2 * Hp * 4) + 2 * TILE_B * Hp * 4)
    vmem_limit = int(min(64 << 20, max(need + (4 << 20), 16 << 20)))

    smem = pl.BlockSpec(memory_space=pltpu.MemorySpace.SMEM)

    scores_i32, loss_parts = pl.pallas_call(
        _pred_layer_kernel,
        out_shape=(jax.ShapeDtypeStruct((B, 1), jnp.int32),
                   jax.ShapeDtypeStruct((G, 1, 1), jnp.float32)),
        grid_spec=pltpu.PrefetchScalarGridSpec(
            num_scalar_prefetch=0,
            grid=(G,),
            in_specs=[
                smem,                                            # [threshold, b2]
                smem,                                            # [B]
                pl.BlockSpec((TILE_B, D), lambda i: (i, 0)),     # x rows (pipelined)
                pl.BlockSpec((TILE_B, 3), lambda i: (i, 0)),     # [b, c, w] rows
                pl.BlockSpec((D, Hp), lambda i: (0, 0)),         # w1 (resident)
                pl.BlockSpec((1, Hp), lambda i: (0, 0)),         # b1 (resident)
                pl.BlockSpec((1, Hp), lambda i: (0, 0)),         # w2 (resident)
            ],
            out_specs=(
                pl.BlockSpec((TILE_B, 1), lambda i: (i, 0)),     # scores
                pl.BlockSpec((1, 1, 1), lambda i: (i, 0, 0)),    # per-tile loss
            ),
        ),
        compiler_params=pltpu.CompilerParams(
            dimension_semantics=("parallel",),
            vmem_limit_bytes=vmem_limit,
        ),
    )(sc_f32, n_rows, x, yw, w1p, b1p, w2p)

    scores = scores_i32[:, 0].astype(jnp.bool_)
    loss = jnp.sum(loss_parts) / jnp.float32(B)
    return scores, loss


def _reference(x, y, params, threshold, weight_out=None):
    # Mirrors the kernel numerics (bf16 MXU operands, f32 accumulation/loss math).
    w1, b1, w2, b2 = params
    h = jnp.dot(x.astype(jnp.bfloat16), w1.astype(jnp.bfloat16),
                preferred_element_type=jnp.float32)
    h = jnp.maximum(h + b1.astype(jnp.float32), 0.0)
    y1 = jnp.sum(h * w2.astype(jnp.float32), axis=-1) + b2.astype(jnp.float32)[0, 0]
    y2 = y1                                  # proj1 and proj2 share weights
    scores = y1 >= threshold
    b, c = y[:, 0], y[:, 1]
    if weight_out is None:
        loss = jnp.mean((y1 - b) ** 2) + jnp.mean((y2 - c) ** 2)
    else:
        loss = jnp.mean(weight_out * ((y1 - b) ** 2 + (y2 - c) ** 2))
    return scores, loss


if __name__ == "__main__":
    # Small shapes consistent with the module: x (batch, d_model), y (batch, 2).
    B, D, H = 8, 32, 64
    threshold = 0.5

    key = jax.random.PRNGKey(0)
    kx, ky, k1, k2, k3, k4, kw = jax.random.split(key, 7)

    x = jax.random.normal(kx, (B, D), jnp.float32)
    y = jax.random.normal(ky, (B, 2), jnp.float32)

    # Deterministic parameter init (torch Linear-ish scale), stored as (in, out).
    w1 = jax.random.uniform(k1, (D, H), jnp.float32, -1.0, 1.0) / jnp.sqrt(D)
    b1 = jax.random.uniform(k2, (1, H), jnp.float32, -1.0, 1.0) / jnp.sqrt(D)
    w2 = jax.random.uniform(k3, (1, H), jnp.float32, -1.0, 1.0) / jnp.sqrt(H)
    b2 = jax.random.uniform(k4, (1, 1), jnp.float32, -1.0, 1.0) / jnp.sqrt(H)
    params = (w1, b1, w2, b2)

    weight_out = jax.random.uniform(kw, (B,), jnp.float32, 0.5, 1.5)

    # Unweighted path
    scores, loss = pred_layer_4_regression(x, y, params, threshold)
    jax.block_until_ready((scores, loss))
    ref_scores, ref_loss = _reference(x, y, params, threshold)
    assert bool(jnp.all(scores == ref_scores))
    assert float(jnp.abs(loss - ref_loss)) < 1e-3, (float(loss), float(ref_loss))

    # Weighted path
    scores_w, loss_w = pred_layer_4_regression(x, y, params, threshold, weight_out)
    jax.block_until_ready((scores_w, loss_w))
    ref_scores_w, ref_loss_w = _reference(x, y, params, threshold, weight_out)
    assert bool(jnp.all(scores_w == ref_scores_w))
    assert float(jnp.abs(loss_w - ref_loss_w)) < 1e-3, (float(loss_w), float(ref_loss_w))

    print("KERNEL_OK")
</pallas_src>

<mosaic_0001>
module attributes {stable_mosaic.version = 11 : i64} {
  func.func @_pred_layer_kernel(%arg0: i32, %arg1: memref<2xf32, #tpu.memory_space<smem>>, %arg2: memref<1xi32, #tpu.memory_space<smem>>, %arg3: memref<8x32xf32, #tpu.memory_space<vmem>>, %arg4: memref<8x3xf32, #tpu.memory_space<vmem>>, %arg5: memref<32x128xbf16, #tpu.memory_space<vmem>>, %arg6: memref<1x128xf32, #tpu.memory_space<vmem>>, %arg7: memref<1x128xf32, #tpu.memory_space<vmem>>, %arg8: memref<8x1xi32, #tpu.memory_space<vmem>>, %arg9: memref<1x1x1xf32, #tpu.memory_space<vmem>>) attributes {dimension_semantics = [#tpu.dimension_semantics<parallel>], iteration_bounds = array<i64: 1>, scalar_prefetch = 0 : i64, scratch_operands = 0 : i64, tpu.core_type = #tpu.core_type<tc>, window_params = [{transform_indices = @transform_0, window_bounds = array<i64: 2>}, {transform_indices = @transform_1, window_bounds = array<i64: 1>}, {transform_indices = @transform_2, window_bounds = array<i64: 8, 32>}, {transform_indices = @transform_3, window_bounds = array<i64: 8, 3>}, {pipeline_mode = #tpu.pipeline_mode<synchronous>, transform_indices = @transform_4, window_bounds = array<i64: 32, 128>}, {pipeline_mode = #tpu.pipeline_mode<synchronous>, transform_indices = @transform_5, window_bounds = array<i64: 1, 128>}, {pipeline_mode = #tpu.pipeline_mode<synchronous>, transform_indices = @transform_6, window_bounds = array<i64: 1, 128>}, {transform_indices = @transform_7, window_bounds = array<i64: 8, 1>}, {transform_indices = @transform_8, window_bounds = array<i64: 1, 1, 1>}]} {
    %c0 = arith.constant 0 : index
    %0 = memref.load %arg1[%c0] : memref<2xf32, #tpu.memory_space<smem>>
    %c1 = arith.constant 1 : index
    %1 = memref.load %arg1[%c1] : memref<2xf32, #tpu.memory_space<smem>>
    %c0_0 = arith.constant 0 : index
    %2 = memref.load %arg2[%c0_0] : memref<1xi32, #tpu.memory_space<smem>>
    %c0_1 = arith.constant 0 : index
    %c0_2 = arith.constant 0 : index
    %3 = vector.load %arg3[%c0_1, %c0_2] : memref<8x32xf32, #tpu.memory_space<vmem>>, vector<8x32xf32>
    %4 = arith.truncf %3 : vector<8x32xf32> to vector<8x32xbf16>
    %c0_3 = arith.constant 0 : index
    %c0_4 = arith.constant 0 : index
    %5 = vector.load %arg5[%c0_3, %c0_4] : memref<32x128xbf16, #tpu.memory_space<vmem>>, vector<32x128xbf16>
    %cst = arith.constant dense<0.000000e+00> : vector<8x128xf32>
    %6 = tpu.matmul %4, %5, %cst {dimension_numbers = #tpu.dot_dimension_numbers<[1], [0], [0], [1], [0, 0, 1, 1], [], []>} : vector<8x32xbf16>, vector<32x128xbf16>, vector<8x128xf32> -> vector<8x128xf32>
    %c0_5 = arith.constant 0 : index
    %c0_6 = arith.constant 0 : index
    %7 = vector.load %arg6[%c0_5, %c0_6] : memref<1x128xf32, #tpu.memory_space<vmem>>, vector<1x128xf32>
    %8 = vector.broadcast %7 : vector<1x128xf32> to vector<8x128xf32>
    %9 = arith.addf %6, %8 : vector<8x128xf32>
    %cst_7 = arith.constant 0.000000e+00 : f32
    %10 = vector.broadcast %cst_7 : f32 to vector<8x128xf32>
    %11 = arith.maximumf %9, %10 : vector<8x128xf32>
    %c0_8 = arith.constant 0 : index
    %c0_9 = arith.constant 0 : index
    %12 = vector.load %arg7[%c0_8, %c0_9] : memref<1x128xf32, #tpu.memory_space<vmem>>, vector<1x128xf32>
    %13 = vector.broadcast %12 : vector<1x128xf32> to vector<8x128xf32>
    %14 = arith.mulf %11, %13 : vector<8x128xf32>
    %cst_10 = arith.constant dense<0.000000e+00> : vector<8xf32>
    %15 = vector.multi_reduction <add>, %14, %cst_10 [1] : vector<8x128xf32> to vector<8xf32>
    %16 = vector.shape_cast %15 : vector<8xf32> to vector<8x1xf32>
    %17 = vector.broadcast %1 : f32 to vector<8x1xf32>
    %18 = arith.addf %16, %17 : vector<8x1xf32>
    %19 = vector.broadcast %0 : f32 to vector<8x1xf32>
    %20 = arith.cmpf oge, %18, %19 : vector<8x1xf32>
    %21 = arith.extui %20 : vector<8x1xi1> to vector<8x1xi32>
    %c0_11 = arith.constant 0 : index
    %c0_12 = arith.constant 0 : index
    %22 = vector.load %arg8[%c0_11, %c0_12] : memref<8x1xi32, #tpu.memory_space<vmem>>, vector<8x1xi32>
    tpu.vector_store %arg8[%c0_11, %c0_12], %21 {strides = array<i32>} : memref<8x1xi32, #tpu.memory_space<vmem>>, vector<8x1xi32>,
    %c8_i32 = arith.constant 8 : i32
    %23 = arith.muli %arg0, %c8_i32 : i32
    %24 = tpu.iota {dimensions = array<i32: 0>} : vector<8x1xi32>
    %25 = vector.broadcast %23 : i32 to vector<8x1xi32>
    %26 = arith.addi %25, %24 : vector<8x1xi32>
    %27 = vector.broadcast %2 : i32 to vector<8x1xi32>
    %28 = arith.cmpi slt, %26, %27 : vector<8x1xi32>
    %c0_13 = arith.constant 0 : index
    %c0_14 = arith.constant 0 : index
    %29 = vector.load %arg4[%c0_13, %c0_14] : memref<8x3xf32, #tpu.memory_space<vmem>>, vector<8x1xf32>
    %c0_15 = arith.constant 0 : index
    %c1_16 = arith.constant 1 : index
    %30 = vector.load %arg4[%c0_15, %c1_16] : memref<8x3xf32, #tpu.memory_space<vmem>>, vector<8x1xf32>
    %c0_17 = arith.constant 0 : index
    %c2 = arith.constant 2 : index
    %31 = vector.load %arg4[%c0_17, %c2] : memref<8x3xf32, #tpu.memory_space<vmem>>, vector<8x1xf32>
    %32 = arith.subf %18, %29 : vector<8x1xf32>
    %33 = arith.subf %18, %29 : vector<8x1xf32>
    %34 = arith.mulf %32, %33 : vector<8x1xf32>
    %35 = arith.subf %18, %30 : vector<8x1xf32>
    %36 = arith.subf %18, %30 : vector<8x1xf32>
    %37 = arith.mulf %35, %36 : vector<8x1xf32>
    %38 = arith.addf %34, %37 : vector<8x1xf32>
    %39 = arith.mulf %31, %38 : vector<8x1xf32>
    %cst_18 = arith.constant 0.000000e+00 : f32
    %40 = vector.broadcast %cst_18 : f32 to vector<8x1xf32>
    %41 = arith.select %28, %39, %40 : vector<8x1xi1>, vector<8x1xf32>
    %cst_19 = arith.constant dense<0.000000e+00> : vector<1xf32>
    %42 = vector.multi_reduction <add>, %41, %cst_19 [0] : vector<8x1xf32> to vector<1xf32>
    %43 = vector.shape_cast %42 : vector<1xf32> to vector<1x1xf32>
    %c0_20 = arith.constant 0 : index
    %c0_21 = arith.constant 0 : index
    %c0_22 = arith.constant 0 : index
    %44 = vector.load %arg9[%c0_20, %c0_21, %c0_22] : memref<1x1x1xf32, #tpu.memory_space<vmem>>, vector<1x1x1xf32>
    %45 = vector.shape_cast %44 : vector<1x1x1xf32> to vector<1x1xf32>
    %46 = vector.shape_cast %43 : vector<1x1xf32> to vector<1x1x1xf32>
    tpu.vector_store %arg9[%c0_20, %c0_21, %c0_22], %46 {strides = array<i32>} : memref<1x1x1xf32, #tpu.memory_space<vmem>>, vector<1x1x1xf32>,
    return
  }
  func.func @transform_0(%arg0: i32) -> i32 {
    %c0_i32 = arith.constant 0 : i32
    %c0_i32_0 = arith.constant 0 : i32
    return %c0_i32 : i32
  }
  func.func @transform_1(%arg0: i32) -> i32 {
    %c0_i32 = arith.constant 0 : i32
    %c0_i32_0 = arith.constant 0 : i32
    return %c0_i32 : i32
  }
  func.func @transform_2(%arg0: i32) -> (i32, i32) {
    %c0_i32 = arith.constant 0 : i32
    %c0_i32_0 = arith.constant 0 : i32
    return %arg0, %c0_i32 : i32, i32
  }
  func.func @transform_3(%arg0: i32) -> (i32, i32) {
    %c0_i32 = arith.constant 0 : i32
    %c0_i32_0 = arith.constant 0 : i32
    return %arg0, %c0_i32 : i32, i32
  }
  func.func @transform_4(%arg0: i32) -> (i32, i32) {
    %c0_i32 = arith.constant 0 : i32
    %c0_i32_0 = arith.constant 0 : i32
    %c0_i32_1 = arith.constant 0 : i32
    return %c0_i32, %c0_i32_0 : i32, i32
  }
  func.func @transform_5(%arg0: i32) -> (i32, i32) {
    %c0_i32 = arith.constant 0 : i32
    %c0_i32_0 = arith.constant 0 : i32
    %c0_i32_1 = arith.constant 0 : i32
    return %c0_i32, %c0_i32_0 : i32, i32
  }
  func.func @transform_6(%arg0: i32) -> (i32, i32) {
    %c0_i32 = arith.constant 0 : i32
    %c0_i32_0 = arith.constant 0 : i32
    %c0_i32_1 = arith.constant 0 : i32
    return %c0_i32, %c0_i32_0 : i32, i32
  }
  func.func @transform_7(%arg0: i32) -> (i32, i32) {
    %c0_i32 = arith.constant 0 : i32
    %c0_i32_0 = arith.constant 0 : i32
    return %arg0, %c0_i32 : i32, i32
  }
  func.func @transform_8(%arg0: i32) -> (i32, i32, i32) {
    %c0_i32 = arith.constant 0 : i32
    %c0_i32_0 = arith.constant 0 : i32
    %c0_i32_1 = arith.constant 0 : i32
    return %arg0, %c0_i32, %c0_i32_0 : i32, i32, i32
  }
}

</mosaic_0001>

<llo_original>
// kernel: tpu_custom_call.1
$region0: #{tpu_custom_call.1}
  #allocation0 [shape = 'u32[]', space=smem, size = 0x4, offset = 0x4, fixed_abs, tag = 'smem constant byte address 0x4 - core index']
  #allocation1 [shape = 'u32[144,128]{1,0:T(1,128)}', space=vmem, size = 0x12000, scoped, tag = 'internal scratch']
  #allocation2 [shape = 's32[1]{0:T(128)S(6)}', space=smem, size = 0x200, scoped, tag = 'scoped memory for tpu_custom_call.1']
  %s0 = inlined_call_operand.vmem [shape: f32[2], index: 0, kind: input, shape index: {}]
  %s1 = inlined_call_operand.<no memory space> [shape: s32[1], index: 1, kind: input, shape index: {}]
  %s2 = inlined_call_operand.vmem [shape: f32[8,32], index: 2, kind: input, shape index: {}]
  %s3 = inlined_call_operand.vmem [shape: f32[8,3], index: 3, kind: input, shape index: {}]
  %s4 = inlined_call_operand.vmem [shape: bf16[32,128], index: 4, kind: input, shape index: {}]
  %s5 = inlined_call_operand.vmem [shape: f32[1,128], index: 5, kind: input, shape index: {}]
  %s6 = inlined_call_operand.vmem [shape: f32[1,128], index: 6, kind: input, shape index: {}]
  %s7 = inlined_call_operand.vmem [shape: s32[8,1], index: 7, kind: output, shape index: {0}]
  %s8 = inlined_call_operand.hbm [shape: f32[1,1,1], index: 8, kind: output, shape index: {1}]
  %9 = xla_tuple %s7, %s8
  %s10 = sld [smem:[#allocation0]]
  $region50: #{tpu_custom_call.1} parent=0
    _
  %s12 = ssub.s32 1, %s10
  %s13 = scalar_select 0, %s12, %s10
  %14 = sst [smem:[#allocation2]] %s1
  $region1: #{tpu_custom_call.1} parent=0
    #allocation3 [shape = 'u8[512]{0}', space=smem, size = 0x200, scoped, tag = 'input window, operand 0, single buffered']
    #allocation4 [shape = 's32[1]{0}', space=sflag, size = 0x4, scoped, tag = 'scoped memory for tpu_custom_call.1']
    #allocation5 [shape = 's32[1]{0}', space=sflag, size = 0x4, scoped, tag = 'scoped memory for tpu_custom_call.1']
    #allocation6 [shape = 'u8[512]{0}', space=vmem, size = 0x400, scoped, tag = 'output window, operand 1, single buffered']
    %15 = vsyncpa [#allocation5], 0
    %16 = vsyncpa [#allocation4], 0
    // Predicated region
    $region2: #{tpu_custom_call.1} parent=1 // pred_check
      _
    $region3: #{tpu_custom_call.1} parent=1 // pred_check_branch
      %18 = sbr.rel (0) target = $region5
    $region4: #{tpu_custom_call.1} parent=1 // pred_region
      %s20 = ssub.s32 16, 16
      %21 = vsyncadd [#allocation5], %s20
      %s23 = sshll.u32 %s0, 4
      %s24 = int_to_ptr.vmem [resolvable:$true] %s23
      %26 = dma.vmem_to_smem %s24, 16, [#allocation3], [#allocation5]
    $region5: #{tpu_custom_call.1} parent=1 // pred_fallthru
      _
    // Predicated region
    $region6: #{tpu_custom_call.1} parent=1 // pred_check
      _
    $region7: #{tpu_custom_call.1} parent=1 // pred_check_branch
      %28 = sbr.rel (0) target = $region9
    $region8: #{tpu_custom_call.1} parent=1 // pred_region
      _
    $region9: #{tpu_custom_call.1} parent=1 // pred_fallthru
      _
    // Predicated region
    $region10: #{tpu_custom_call.1} parent=1 // pred_check
      _
    $region11: #{tpu_custom_call.1} parent=1 // pred_check_branch
      %30 = sbr.rel (0) target = $region13
    $region12: #{tpu_custom_call.1} parent=1 // pred_region
      _
    $region13: #{tpu_custom_call.1} parent=1 // pred_fallthru
      _
    // Predicated region
    $region14: #{tpu_custom_call.1} parent=1 // pred_check
      _
    $region15: #{tpu_custom_call.1} parent=1 // pred_check_branch
      %32 = sbr.rel (0) target = $region17
    $region16: #{tpu_custom_call.1} parent=1 // pred_region
      _
    $region17: #{tpu_custom_call.1} parent=1 // pred_fallthru
      _
    // Predicated region
    $region18: #{tpu_custom_call.1} parent=1 // pred_check
      _
    $region19: #{tpu_custom_call.1} parent=1 // pred_check_branch
      %34 = sbr.rel (0) target = $region21
    $region20: #{tpu_custom_call.1} parent=1 // pred_region
      _
    $region21: #{tpu_custom_call.1} parent=1 // pred_fallthru
      _
    // Predicated region
    $region22: #{tpu_custom_call.1} parent=1 // pred_check
      _
    $region23: #{tpu_custom_call.1} parent=1 // pred_check_branch
      %36 = sbr.rel (0) target = $region25
    $region24: #{tpu_custom_call.1} parent=1 // pred_region
      _
    $region25: #{tpu_custom_call.1} parent=1 // pred_fallthru
      _
    // Predicated region
    $region26: #{tpu_custom_call.1} parent=1 // pred_check
      _
    $region27: #{tpu_custom_call.1} parent=1 // pred_check_branch
      %38 = sbr.rel (0) target = $region29
    $region28: #{tpu_custom_call.1} parent=1 // pred_region
      _
    $region29: #{tpu_custom_call.1} parent=1 // pred_fallthru
      _
    // Predicated region
    $region30: #{tpu_custom_call.1} parent=1 // pred_check
      _
    $region31: #{tpu_custom_call.1} parent=1 // pred_check_branch
      %40 = sbr.rel (0) target = $region33
    $region32: #{tpu_custom_call.1} parent=1 // pred_region
      %41 = dma.done [#allocation5], 16
    $region33: #{tpu_custom_call.1} parent=1 // pred_fallthru
      _
    %42 = sfence
    %s44 = sld [smem:[#allocation3]]
    %s45 = sld [smem:[#allocation3 + $0x1]]
    %s46 = sld [smem:[#allocation2]]
    %v47 = vld [vmem:[%s2] sm:$0xff]
    %v48 = vpack.c.bf16 %v47, %v47
    %v49 = vld [vmem:[%s4] sm:$0xf]
    %v50 = vld [vmem:[%s4 + $0x4] sm:$0xf]
    %v51 = vld [vmem:[%s4 + $0x8] sm:$0xf]
    %v52 = vld [vmem:[%s4 + $0xc] sm:$0xf]
    %v53 = vld [vmem:[%s5] sm:$0x1]
    %v55 = vlaneseq
    %v56 = vshrl.u32 %v55, 7
    %v57 = vsub.s32 0, %v56
    %v58 = vrot.slane %v53, %v57
    %v64 = vunpack.c.l.b16 %v49
    %v65 = vunpack.c.l.b16 %v50
    %v66 = vunpack.c.l.b16 %v51
    %v67 = vunpack.c.l.b16 %v52
    %v68 = vpack.c.b16 %v65, %v64
    %v69 = vpack.c.b16 %v67, %v66
    %vm72 = vcmask 261120
    %v74 = vsel %vm72, %v48, 0
    %76 = vmatprep.subr.bf16.mxu0 0
    %77 = vmatpush1.bf16.msra.mxu0 %v68
    %78 = vmatprep.subr.bf16.mxu0 0
    %79 = vmatpush1.bf16.msra.mxu0 %v69
    %80 = vmatprep.subr.bf16.mxu0 0
    %81 = vmatpush1.bf16.msra.mxu0 0
    %82 = vmatprep.subr.bf16.mxu0 0
    %83 = vmatpush1.bf16.msra.mxu0 0
    %84 = vmatprep.subr.bf16.mxu0 0
    %85 = vmatpush1.bf16.msra.mxu0 0
    %86 = vmatprep.subr.bf16.mxu0 0
    %87 = vmatpush1.bf16.msra.mxu0 0
    %88 = vmatprep.subr.bf16.mxu0 0
    %89 = vmatpush1.bf16.msra.mxu0 0
    %90 = vmatprep.subr.bf16.mxu0 0
    %91 = vmatpush1.bf16.msra.mxu0 0
    %92 = vmatprep.subr.bf16.mxu0 0
    %93 = vmatpush1.bf16.msra.mxu0 0
    %94 = vmatprep.subr.bf16.mxu0 0
    %95 = vmatpush1.bf16.msra.mxu0 0
    %96 = vmatprep.subr.bf16.mxu0 0
    %97 = vmatpush1.bf16.msra.mxu0 0
    %98 = vmatprep.subr.bf16.mxu0 0
    %99 = vmatpush1.bf16.msra.mxu0 0
    %100 = vmatprep.subr.bf16.mxu0 0
    %101 = vmatpush1.bf16.msra.mxu0 0
    %102 = vmatprep.subr.bf16.mxu0 0
    %103 = vmatpush1.bf16.msra.mxu0 0
    %104 = vmatprep.subr.bf16.mxu0 0
    %105 = vmatpush1.bf16.msra.mxu0 0
    %106 = vmatprep.subr.bf16.mxu0 0
    %107 = vmatpush1.bf16.msra.mxu0 0
    %108 = vmatprep.mubr.bf16.mxu0 0
    %109 = vmatmul.mubr.bf16.gmra.mrb[0].mxu0 %v74
    %v110 = vpop.f32.mrb[0].mxu0
    %v111 = vadd.f32 %v58, %v110
    %v112 = vpop.f32.mrb[0].mxu0
    %v113 = vpop.f32.mrb[0].mxu0
    %v114 = vpop.f32.mrb[0].mxu0
    %115 = vdwg.mxu0
    %v116 = vmax.f32 %v111, 0.0
    %v117 = vld [vmem:[%s6] sm:$0x1]
    %v119 = vlaneseq
    %v120 = vshrl.u32 %v119, 7
    %v121 = vsub.s32 0, %v120
    %v122 = vrot.slane %v117, %v121
    %v124 = vmul.f32 %v116, %v122
    %125 = vadd.xlane.f32.xlu0 %v124
    %v126 = vpop.xlane.xlu0 %125
    %v127 = vstv %s45
    %v128 = vadd.f32 %v126, %v127
    %v129 = vstv %s44
    %vm130 = vcmp.ge.f32.partialorder %v128, %v129
    %v131 = vsel %vm130, 1, 0
    %vm132 = vcmask 7168
    %133 = vst.msk [vmem:[%s7] sm:$0xff] %vm132, %v131
    %s134 = smul.u32 0, 8
    %v135 = vlaneseq
    %v136 = vshrl.u32 %v135, 7
    %v137 = vstv %s134
    %v138 = vadd.s32 %v137, %v136
    %v139 = vstv %s46
    %vm140 = vcmp.lt.s32.totalorder %v138, %v139
    %v141 = vld [vmem:[%s3] sm:$0xff]
    %v142 = vsub.f32 %v128, %v141
    %v143 = vmul.f32 %v142, %v142
    %145 = vrot.lane.b32.xlu0 %v143, 127
    %v146 = vpop.permute.xlu0 %145
    %v148 = vadd.f32 %v143, %v146
    %150 = vrot.lane.b32.xlu0 %v148, 2
    %v151 = vpop.permute.xlu0 %150
    %v153 = vmul.f32 %v141, %v151
    %v154 = vsel %vm140, %v153, 0.0
    %vm155 = vcmask 23568
    %v156 = vsel %vm155, %v154, 0.0
    %v157 = vrot.slane %v156, 4
    %v158 = vadd.f32 %v156, %v157
    %v159 = vrot.slane %v158, 2
    %v160 = vadd.f32 %v158, %v159
    %v161 = vrot.slane %v160, 1
    %v162 = vadd.f32 %v160, %v161
    %164 = vrot.lane.b32.xlu0 %v162, 126
    %v165 = vpop.permute.xlu0 %164
    %vm167 = vcmask 0
    %168 = vst.msk [vmem:[#allocation6] sm:$0x1] %vm167, %v165
    // Predicated region
    $region34: #{tpu_custom_call.1} parent=1 // pred_check
      _
    $region35: #{tpu_custom_call.1} parent=1 // pred_check_branch
      %170 = sbr.rel (0) target = $region37
    $region36: #{tpu_custom_call.1} parent=1 // pred_region
      _
    $region37: #{tpu_custom_call.1} parent=1 // pred_fallthru
      _
    // Predicated region
    $region38: #{tpu_custom_call.1} parent=1 // pred_check
      _
    $region39: #{tpu_custom_call.1} parent=1 // pred_check_branch
      %172 = sbr.rel (0) target = $region41
    $region40: #{tpu_custom_call.1} parent=1 // pred_region
      %s174 = ssub.s32 16, 16
      %175 = vsyncadd [#allocation4], %s174
      %s177 = sshll.u32 [#allocation6], 4
      %s178 = int_to_ptr.vmem [resolvable:$true] %s177
      %180 = dma.vmem_to_hbm [thread:$0]  %s178, 16, %s8, [#allocation4]
    $region41: #{tpu_custom_call.1} parent=1 // pred_fallthru
      _
    // Predicated region
    $region42: #{tpu_custom_call.1} parent=1 // pred_check
      _
    $region43: #{tpu_custom_call.1} parent=1 // pred_check_branch
      %182 = sbr.rel (0) target = $region45
    $region44: #{tpu_custom_call.1} parent=1 // pred_region
      _
    $region45: #{tpu_custom_call.1} parent=1 // pred_fallthru
      _
    // Predicated region
    $region46: #{tpu_custom_call.1} parent=1 // pred_check
      _
    $region47: #{tpu_custom_call.1} parent=1 // pred_check_branch
      %184 = sbr.rel (0) target = $region49
    $region48: #{tpu_custom_call.1} parent=1 // pred_region
      %185 = dma.done [#allocation4], 16
    $region49: #{tpu_custom_call.1} parent=1 // pred_fallthru
      _
    %186 = vsyncpa [#allocation4], 1
    %187 = vsyncpa [#allocation5], 1

</llo_original>
